<compile_context>
chip_gen: v7x
topology: tpu7x:2x2x1
jax: 0.10.0
libtpu: 0.0.40
codegen_flags: <defaults>
</compile_context>

<pallas_src>
import functools

import jax
import jax.numpy as jnp
from jax.experimental import pallas as pl
from jax.experimental.pallas import tpu as pltpu


# ----------------------------------------------------------------------------
# Plain-JAX grouping glue (no clean Pallas equivalent).
# ----------------------------------------------------------------------------
def square_distance(src, dst):
    # src: [B, N, C], dst: [B, M, C] -> [B, N, M]
    dist = -2.0 * jnp.einsum("bnc,bmc->bnm", src, dst)
    dist = dist + jnp.sum(src ** 2, -1)[:, :, None]
    dist = dist + jnp.sum(dst ** 2, -1)[:, None, :]
    return dist


def index_points(points, idx):
    # points: [B, N, C], idx: [B, ...] -> [B, ..., C]
    B = points.shape[0]
    flat = idx.reshape(B, -1)
    out = jnp.take_along_axis(points, flat[..., None], axis=1)
    return out.reshape(idx.shape + (points.shape[-1],))


def farthest_point_sample(xyz, npoint, key):
    # xyz: [B, N, 3] -> [B, npoint] int32
    B, N, _ = xyz.shape
    farthest = jax.random.randint(key, (B,), 0, N, dtype=jnp.int32)
    distance = jnp.full((B, N), 1e10, dtype=xyz.dtype)
    centroids = jnp.zeros((B, npoint), dtype=jnp.int32)
    batch_idx = jnp.arange(B)

    def body(i, carry):
        centroids, distance, farthest = carry
        centroids = centroids.at[:, i].set(farthest)
        centroid = xyz[batch_idx, farthest, :][:, None, :]        # [B, 1, 3]
        dist = jnp.sum((xyz - centroid) ** 2, -1)                  # [B, N]
        distance = jnp.minimum(distance, dist)
        farthest = jnp.argmax(distance, -1).astype(jnp.int32)
        return centroids, distance, farthest

    centroids, _, _ = jax.lax.fori_loop(0, npoint, body,
                                        (centroids, distance, farthest))
    return centroids


def query_ball_point(radius, nsample, xyz, new_xyz):
    B, N, _ = xyz.shape
    S = new_xyz.shape[1]
    group_idx = jnp.broadcast_to(jnp.arange(N, dtype=jnp.int32), (B, S, N))
    sqrdists = square_distance(new_xyz, xyz)
    group_idx = jnp.where(sqrdists > radius ** 2, jnp.int32(N), group_idx)
    group_idx = jnp.sort(group_idx, axis=-1)[:, :, :nsample]
    group_first = jnp.broadcast_to(group_idx[:, :, 0:1], (B, S, nsample))
    group_idx = jnp.where(group_idx == N, group_first, group_idx)
    return group_idx


def sample_and_group(npoint, radius, nsample, xyz, points, key):
    B, N, C = xyz.shape
    fps_idx = farthest_point_sample(xyz, npoint, key)              # [B, S]
    new_xyz = index_points(xyz, fps_idx)                           # [B, S, 3]
    idx = query_ball_point(radius, nsample, xyz, new_xyz)          # [B, S, K]
    # TODO(synk): the K-fold gather duplication in HBM could be avoided by a
    # PrefetchScalarGridSpec + pl.Element row-gather index_map on `idx` feeding
    # the first-layer kernel tile-by-tile; kept in plain JAX for now.
    grouped_xyz = index_points(xyz, idx)                           # [B, S, K, 3]
    grouped_xyz_norm = grouped_xyz - new_xyz[:, :, None, :]
    if points is not None:
        grouped_points = index_points(points, idx)                 # [B, S, K, D]
        new_points = jnp.concatenate([grouped_xyz_norm, grouped_points], axis=-1)
    else:
        new_points = grouped_xyz_norm
    return new_xyz, new_points


def sample_and_group_all(xyz, points):
    B, N, C = xyz.shape
    new_xyz = jnp.zeros((B, 1, C), dtype=xyz.dtype)
    grouped_xyz = xyz[:, None, :, :]
    if points is not None:
        new_points = jnp.concatenate([grouped_xyz, points[:, None, :, :]], axis=-1)
    else:
        new_points = grouped_xyz
    return new_xyz, new_points


# ----------------------------------------------------------------------------
# Pallas kernels: tiled  [BN(prev) + ReLU -> matmul -> BN partial stats]  per
# layer, then a tiled  [BN(last) + ReLU -> max over nsample]  finalizer.
# ----------------------------------------------------------------------------
_LANE = 128
_VMEM_LIMIT_BYTES = 48 * 1024 * 1024    # raised above the 16/32 MiB defaults,
                                        # but under v7x's 64 MiB physical VMEM
_TILE_BUDGET_BYTES = 12 * 1024 * 1024   # double-buffered in+out tile budget


def _round_up(x, m):
    return ((x + m - 1) // m) * m


def _pick_tile(total, target, align8):
    """Largest divisor of `total` that is <= target (and a multiple of 8 when
    it will be a sublane-dim block size); falls back to the full extent."""
    if total <= target:
        return total
    step = 8 if align8 else 1
    d = (min(target, total) // step) * step
    while d >= step:
        if total % d == 0:
            return d
        d -= step
    return total


def _layer_kernel(*refs, apply_prev):
    """One row-tile of M = B*S*K:
       [prev-layer BN folded scale/shift + ReLU] -> bf16 matmul (f32 acc)
       -> write pre-BN activations + per-tile (sum, sum-of-squares) stats."""
    if apply_prev:
        scale_ref, shift_ref, x_ref, w_ref, h_ref, stats_ref = refs
    else:
        x_ref, w_ref, h_ref, stats_ref = refs

    x = x_ref[...].astype(jnp.float32)
    if apply_prev:
        # previous layer's BatchNorm folded to a single multiply-add, then ReLU
        x = jnp.maximum(x * scale_ref[...] + shift_ref[...], 0.0)

    # MXU matmul: bf16 operands, f32 accumulation.  The conv bias is omitted:
    # training-mode BN subtracts the batch mean, which cancels it exactly.
    h = jnp.dot(x.astype(jnp.bfloat16), w_ref[...].astype(jnp.bfloat16),
                preferred_element_type=jnp.float32)
    h_ref[...] = h

    # single-pass BN partial statistics for this tile (combined across tiles
    # in plain JAX); accumulation stays in f32.
    stats_ref[0, 0:1, :] = jnp.sum(h, axis=0, keepdims=True)
    stats_ref[0, 1:2, :] = jnp.sum(h * h, axis=0, keepdims=True)


def _norm_relu_max_kernel(scale_ref, shift_ref, h_ref, out_ref):
    """Last layer's BN scale/shift + ReLU, then max over the nsample axis."""
    h = h_ref[...]                                    # (tile_g, K, Cpad) f32
    scale = scale_ref[...][:, None, :]                # (1, 1, Cpad)
    shift = shift_ref[...][:, None, :]
    y = jnp.maximum(h * scale + shift, 0.0)
    out_ref[...] = jnp.max(y, axis=1, keepdims=True)  # lane-dense (tile_g,1,Cpad)


def pointnet_sa_mlp(new_points, weights, gammas, betas, eps=1e-5):
    """new_points: [B, S, K, Cin] channels-last -> [B, S, Cout_last] (f32)."""
    B, S, K, Cin = new_points.shape
    G = B * S
    M = G * K
    x = new_points.reshape(M, Cin)        # row order (b, s, k); no wrapper cast

    compiler_params = pltpu.CompilerParams(
        dimension_semantics=("parallel",),          # shard tiles over TCs (v7x)
        vmem_limit_bytes=_VMEM_LIMIT_BYTES)

    h = x
    scale = shift = None
    cin = Cin
    for li, (w, gamma, beta) in enumerate(zip(weights, gammas, betas)):
        cout = w.shape[1]
        cout_pad = _round_up(cout, _LANE)   # lane-dense intermediates & stores

        # zero-pad the weight to (cin, cout_pad) (padded input channels of the
        # previous layer are exactly zero, so padded rows contribute nothing);
        # keep it bf16 so the MXU operand DMA is halved.
        w_pad = jnp.zeros((cin, cout_pad), jnp.float32)
        w_pad = w_pad.at[:w.shape[0], :cout].set(w.astype(jnp.float32))
        w_pad = w_pad.astype(jnp.bfloat16)

        per_row = 2 * 4 * (cin + cout_pad)          # dbl-buffered f32 in + out
        tile_m = _pick_tile(M, max(64, _TILE_BUDGET_BYTES // per_row),
                            align8=True)
        n_tiles = M // tile_m

        operands, in_specs = [], []
        if li > 0:
            operands += [scale, shift]
            in_specs += [pl.BlockSpec((1, cin), lambda i: (0, 0)),
                         pl.BlockSpec((1, cin), lambda i: (0, 0))]
        operands += [h, w_pad]
        in_specs += [pl.BlockSpec((tile_m, cin), lambda i: (i, 0)),
                     pl.BlockSpec((cin, cout_pad), lambda i: (0, 0))]

        h, stats = pl.pallas_call(
            functools.partial(_layer_kernel, apply_prev=(li > 0)),
            grid=(n_tiles,),
            in_specs=in_specs,
            out_specs=(pl.BlockSpec((tile_m, cout_pad), lambda i: (i, 0)),
                       pl.BlockSpec((1, 2, cout_pad), lambda i: (i, 0, 0))),
            out_shape=(jax.ShapeDtypeStruct((M, cout_pad), jnp.float32),
                       jax.ShapeDtypeStruct((n_tiles, 2, cout_pad), jnp.float32)),
            compiler_params=compiler_params,
        )(*operands)

        # combine per-tile partial stats; fold BN into one scale/shift pair
        # (tiny (Cpad,) work, done in plain JAX between calls).
        sums = jnp.sum(stats, axis=0)                      # (2, cout_pad)
        mu = sums[0] / M
        var = jnp.maximum(sums[1] / M - mu * mu, 0.0)      # biased (train) var
        gamma_pad = jnp.zeros((cout_pad,), jnp.float32).at[:cout].set(gamma)
        beta_pad = jnp.zeros((cout_pad,), jnp.float32).at[:cout].set(beta)
        scale_v = gamma_pad * jax.lax.rsqrt(var + eps)
        shift_v = beta_pad - mu * scale_v
        scale = scale_v.reshape(1, cout_pad)
        shift = shift_v.reshape(1, cout_pad)
        cin = cout_pad

    # final pass: last layer's BN + ReLU + max over nsample, tiled over groups.
    c_pad = cin
    h3 = h.reshape(G, K, c_pad)            # free reshape, row order (b, s, k)
    per_group = 2 * 4 * c_pad * (K + 1)
    tile_g = _pick_tile(G, max(1, _TILE_BUDGET_BYTES // per_group), align8=False)
    n_g = G // tile_g

    out = pl.pallas_call(
        _norm_relu_max_kernel,
        grid=(n_g,),
        in_specs=[pl.BlockSpec((1, c_pad), lambda g: (0, 0)),
                  pl.BlockSpec((1, c_pad), lambda g: (0, 0)),
                  pl.BlockSpec((tile_g, K, c_pad), lambda g: (g, 0, 0))],
        out_specs=pl.BlockSpec((tile_g, 1, c_pad), lambda g: (g, 0, 0)),
        out_shape=jax.ShapeDtypeStruct((G, 1, c_pad), jnp.float32),
        compiler_params=compiler_params,
    )(scale, shift, h3)

    cout_last = weights[-1].shape[1]
    return out[:, 0, :cout_last].reshape(B, S, cout_last)


# ----------------------------------------------------------------------------
# Full PointNetSetAbstraction forward
# ----------------------------------------------------------------------------
def pointnet_set_abstraction(xyz, points, params, *, npoint, radius, nsample,
                             group_all, fps_key):
    # xyz: [B, 3, N], points: [B, D, N] or None (PyTorch channel-first inputs)
    xyz_t = jnp.transpose(xyz, (0, 2, 1))                            # [B, N, 3]
    pts_t = jnp.transpose(points, (0, 2, 1)) if points is not None else None
    if group_all:
        new_xyz, new_points = sample_and_group_all(xyz_t, pts_t)
    else:
        new_xyz, new_points = sample_and_group(npoint, radius, nsample,
                                               xyz_t, pts_t, fps_key)
    # new_points: [B, S, K, C]. PyTorch permutes to NCHW before the 1x1 convs;
    # the channels-last Pallas pipeline is mathematically equivalent.
    feat = pointnet_sa_mlp(new_points, params["W"], params["gamma"],
                           params["beta"])                           # [B, S, D']
    new_points_out = jnp.transpose(feat, (0, 2, 1))                  # [B, D', S]
    new_xyz_out = jnp.transpose(new_xyz, (0, 2, 1))                  # [B, 3, S]
    return new_xyz_out, new_points_out


def init_params(key, in_channel, mlp):
    # Deterministic synthetic parameters (shapes from nn.Conv2d / nn.BatchNorm2d).
    # The conv biases are kept only for the reference check: training-mode BN
    # cancels them exactly, so the kernels never read them.
    Ws, bs, gs, betas = [], [], [], []
    last = in_channel
    for out_c in mlp:
        key, k1, k2 = jax.random.split(key, 3)
        Ws.append(jax.random.normal(k1, (last, out_c), jnp.float32) * 0.1)
        bs.append(jax.random.normal(k2, (out_c,), jnp.float32) * 0.1)
        gs.append(jnp.ones((out_c,), jnp.float32))      # BN weight init
        betas.append(jnp.zeros((out_c,), jnp.float32))  # BN bias init
        last = out_c
    return {"W": Ws, "b": bs, "gamma": gs, "beta": betas}


def _reference_mlp(new_points, weights, biases, gammas, betas, eps=1e-5):
    # PyTorch-faithful math (conv bias included, two-pass biased variance);
    # matmul operands cast to bf16 only to mirror the kernel's MXU dtype.
    B, S, K, Cin = new_points.shape
    h = new_points.reshape(B * S * K, Cin).astype(jnp.float32)
    for w, b, g, bt in zip(weights, biases, gammas, betas):
        h = jnp.dot(h.astype(jnp.bfloat16), w.astype(jnp.bfloat16),
                    preferred_element_type=jnp.float32) + b
        mu = jnp.mean(h, axis=0, keepdims=True)
        var = jnp.mean((h - mu) ** 2, axis=0, keepdims=True)
        h = (h - mu) * jax.lax.rsqrt(var + eps) * g + bt
        h = jnp.maximum(h, 0.0)
    cout = h.shape[-1]
    return jnp.max(h.reshape(B * S, K, cout), axis=1).reshape(B, S, cout)


if __name__ == "__main__":
    key = jax.random.PRNGKey(0)
    k_xyz, k_pts, k_fps, k_par = jax.random.split(key, 4)

    B, N, D = 2, 16, 5
    npoint, radius, nsample = 8, 0.4, 8
    in_channel = D + 3            # grouped features are [xyz_norm, point feats]
    mlp = [16, 32]

    xyz = jax.random.normal(k_xyz, (B, 3, N), jnp.float32)
    points = jax.random.normal(k_pts, (B, D, N), jnp.float32)
    params = init_params(k_par, in_channel, mlp)

    new_xyz, new_feat = pointnet_set_abstraction(
        xyz, points, params,
        npoint=npoint, radius=radius, nsample=nsample,
        group_all=False, fps_key=k_fps)
    jax.block_until_ready((new_xyz, new_feat))

    assert new_xyz.shape == (B, 3, npoint)
    assert new_feat.shape == (B, mlp[-1], npoint)

    # correctness check of the fused kernel pipeline against reference math
    xyz_t = jnp.transpose(xyz, (0, 2, 1))
    pts_t = jnp.transpose(points, (0, 2, 1))
    _, grouped = sample_and_group(npoint, radius, nsample, xyz_t, pts_t, k_fps)
    feat_ref = _reference_mlp(grouped, params["W"], params["b"],
                              params["gamma"], params["beta"])
    err = float(jnp.max(jnp.abs(jnp.transpose(feat_ref, (0, 2, 1)) - new_feat)))
    assert err < 1e-2, f"kernel/reference mismatch: max abs err = {err}"

    print("KERNEL_OK")
</pallas_src>

<mosaic_0001>
module attributes {stable_mosaic.version = 11 : i64} {
  func.func @_layer_kernel(%arg0: i32, %arg1: memref<128x8xf32, #tpu.memory_space<vmem>>, %arg2: memref<8x128xbf16, #tpu.memory_space<vmem>>, %arg3: memref<128x128xf32, #tpu.memory_space<vmem>>, %arg4: memref<1x2x128xf32, #tpu.memory_space<vmem>>) attributes {dimension_semantics = [#tpu.dimension_semantics<parallel>], iteration_bounds = array<i64: 1>, scalar_prefetch = 0 : i64, scratch_operands = 0 : i64, tpu.core_type = #tpu.core_type<tc>, window_params = [{transform_indices = @transform_0, window_bounds = array<i64: 128, 8>}, {pipeline_mode = #tpu.pipeline_mode<synchronous>, transform_indices = @transform_1, window_bounds = array<i64: 8, 128>}, {transform_indices = @transform_2, window_bounds = array<i64: 128, 128>}, {transform_indices = @transform_3, window_bounds = array<i64: 1, 2, 128>}]} {
    %c0 = arith.constant 0 : index
    %c0_0 = arith.constant 0 : index
    %0 = vector.load %arg1[%c0, %c0_0] : memref<128x8xf32, #tpu.memory_space<vmem>>, vector<128x8xf32>
    %1 = arith.truncf %0 : vector<128x8xf32> to vector<128x8xbf16>
    %c0_1 = arith.constant 0 : index
    %c0_2 = arith.constant 0 : index
    %2 = vector.load %arg2[%c0_1, %c0_2] : memref<8x128xbf16, #tpu.memory_space<vmem>>, vector<8x128xbf16>
    %cst = arith.constant dense<0.000000e+00> : vector<128x128xf32>
    %3 = tpu.matmul %1, %2, %cst {dimension_numbers = #tpu.dot_dimension_numbers<[1], [0], [0], [1], [0, 0, 1, 1], [], []>} : vector<128x8xbf16>, vector<8x128xbf16>, vector<128x128xf32> -> vector<128x128xf32>
    %c0_3 = arith.constant 0 : index
    %c0_4 = arith.constant 0 : index
    %4 = vector.load %arg3[%c0_3, %c0_4] : memref<128x128xf32, #tpu.memory_space<vmem>>, vector<128x128xf32>
    tpu.vector_store %arg3[%c0_3, %c0_4], %3 {strides = array<i32>} : memref<128x128xf32, #tpu.memory_space<vmem>>, vector<128x128xf32>,
    %cst_5 = arith.constant dense<0.000000e+00> : vector<128xf32>
    %5 = vector.multi_reduction <add>, %3, %cst_5 [0] : vector<128x128xf32> to vector<128xf32>
    %6 = vector.shape_cast %5 : vector<128xf32> to vector<1x128xf32>
    %c0_6 = arith.constant 0 : index
    %c0_7 = arith.constant 0 : index
    %c0_8 = arith.constant 0 : index
    %7 = vector.load %arg4[%c0_6, %c0_7, %c0_8] : memref<1x2x128xf32, #tpu.memory_space<vmem>>, vector<1x1x128xf32>
    %8 = vector.shape_cast %7 : vector<1x1x128xf32> to vector<1x128xf32>
    %9 = vector.shape_cast %6 : vector<1x128xf32> to vector<1x1x128xf32>
    tpu.vector_store %arg4[%c0_6, %c0_7, %c0_8], %9 {strides = array<i32>} : memref<1x2x128xf32, #tpu.memory_space<vmem>>, vector<1x1x128xf32>,
    %10 = arith.mulf %3, %3 : vector<128x128xf32>
    %cst_9 = arith.constant dense<0.000000e+00> : vector<128xf32>
    %11 = vector.multi_reduction <add>, %10, %cst_9 [0] : vector<128x128xf32> to vector<128xf32>
    %12 = vector.shape_cast %11 : vector<128xf32> to vector<1x128xf32>
    %c0_10 = arith.constant 0 : index
    %c1 = arith.constant 1 : index
    %c0_11 = arith.constant 0 : index
    %13 = vector.load %arg4[%c0_10, %c1, %c0_11] : memref<1x2x128xf32, #tpu.memory_space<vmem>>, vector<1x1x128xf32>
    %14 = vector.shape_cast %13 : vector<1x1x128xf32> to vector<1x128xf32>
    %15 = vector.shape_cast %12 : vector<1x128xf32> to vector<1x1x128xf32>
    tpu.vector_store %arg4[%c0_10, %c1, %c0_11], %15 {strides = array<i32>} : memref<1x2x128xf32, #tpu.memory_space<vmem>>, vector<1x1x128xf32>,
    return
  }
  func.func @transform_0(%arg0: i32) -> (i32, i32) {
    %c0_i32 = arith.constant 0 : i32
    %c0_i32_0 = arith.constant 0 : i32
    return %arg0, %c0_i32 : i32, i32
  }
  func.func @transform_1(%arg0: i32) -> (i32, i32) {
    %c0_i32 = arith.constant 0 : i32
    %c0_i32_0 = arith.constant 0 : i32
    %c0_i32_1 = arith.constant 0 : i32
    return %c0_i32, %c0_i32_0 : i32, i32
  }
  func.func @transform_2(%arg0: i32) -> (i32, i32) {
    %c0_i32 = arith.constant 0 : i32
    %c0_i32_0 = arith.constant 0 : i32
    return %arg0, %c0_i32 : i32, i32
  }
  func.func @transform_3(%arg0: i32) -> (i32, i32, i32) {
    %c0_i32 = arith.constant 0 : i32
    %c0_i32_0 = arith.constant 0 : i32
    %c0_i32_1 = arith.constant 0 : i32
    return %arg0, %c0_i32, %c0_i32_0 : i32, i32, i32
  }
}

</mosaic_0001>

<llo_original>
// kernel: tpu_custom_call.1
$region0: #{tpu_custom_call.1}
  #allocation0 [shape = 'u32[]', space=smem, size = 0x4, offset = 0x4, fixed_abs, tag = 'smem constant byte address 0x4 - core index']
  #allocation1 [shape = 'u32[144,128]{1,0:T(1,128)}', space=vmem, size = 0x12000, scoped, tag = 'internal scratch']
  %s0 = inlined_call_operand.vmem [shape: f32[128,8], index: 0, kind: input, shape index: {}]
  %s1 = inlined_call_operand.vmem [shape: bf16[8,128], index: 1, kind: input, shape index: {}]
  %s2 = inlined_call_operand.hbm [shape: f32[128,128], index: 2, kind: output, shape index: {0}]
  %s3 = inlined_call_operand.hbm [shape: f32[1,2,128], index: 3, kind: output, shape index: {1}]
  %4 = xla_tuple %s2, %s3
  %s5 = sld [smem:[#allocation0]]
  $region26: #{tpu_custom_call.1} parent=0
    _
  %s7 = ssub.s32 1, %s5
  %s8 = scalar_select 0, %s7, %s5
  $region1: #{tpu_custom_call.1} parent=0
    #allocation2 [shape = 'u8[65536]{0}', space=vmem, size = 0x10000, scoped, tag = 'output window, operand 0, single buffered']
    #allocation3 [shape = 's32[1]{0}', space=sflag, size = 0x4, scoped, tag = 'scoped memory for tpu_custom_call.1']
    #allocation4 [shape = 'u8[1024]{0}', space=vmem, size = 0x400, scoped, tag = 'output window, operand 1, single buffered']
    #allocation5 [shape = 's32[1]{0}', space=sflag, size = 0x4, scoped, tag = 'scoped memory for tpu_custom_call.1']
    %9 = vsyncpa [#allocation3], 0
    %10 = vsyncpa [#allocation5], 0
    // Predicated region
    $region2: #{tpu_custom_call.1} parent=1 // pred_check
      _
    $region3: #{tpu_custom_call.1} parent=1 // pred_check_branch
      %12 = sbr.rel (0) target = $region5
    $region4: #{tpu_custom_call.1} parent=1 // pred_region
      _
    $region5: #{tpu_custom_call.1} parent=1 // pred_fallthru
      _
    // Predicated region
    $region6: #{tpu_custom_call.1} parent=1 // pred_check
      _
    $region7: #{tpu_custom_call.1} parent=1 // pred_check_branch
      %14 = sbr.rel (0) target = $region9
    $region8: #{tpu_custom_call.1} parent=1 // pred_region
      _
    $region9: #{tpu_custom_call.1} parent=1 // pred_fallthru
      _
    %v16 = vld [vmem:[%s0] sm:$0xff]
    %v17 = vld [vmem:[%s0 + $0x8] sm:$0xff]
    %v18 = vld [vmem:[%s0 + $0x10] sm:$0xff]
    %v19 = vld [vmem:[%s0 + $0x18] sm:$0xff]
    %v20 = vld [vmem:[%s0 + $0x20] sm:$0xff]
    %v21 = vld [vmem:[%s0 + $0x28] sm:$0xff]
    %v22 = vld [vmem:[%s0 + $0x30] sm:$0xff]
    %v23 = vld [vmem:[%s0 + $0x38] sm:$0xff]
    %v24 = vld [vmem:[%s0 + $0x40] sm:$0xff]
    %v25 = vld [vmem:[%s0 + $0x48] sm:$0xff]
    %v26 = vld [vmem:[%s0 + $0x50] sm:$0xff]
    %v27 = vld [vmem:[%s0 + $0x58] sm:$0xff]
    %v28 = vld [vmem:[%s0 + $0x60] sm:$0xff]
    %v29 = vld [vmem:[%s0 + $0x68] sm:$0xff]
    %v30 = vld [vmem:[%s0 + $0x70] sm:$0xff]
    %v31 = vld [vmem:[%s0 + $0x78] sm:$0xff]
    %v32 = vpack.c.bf16 %v17, %v16
    %v33 = vpack.c.bf16 %v19, %v18
    %v34 = vpack.c.bf16 %v21, %v20
    %v35 = vpack.c.bf16 %v23, %v22
    %v36 = vpack.c.bf16 %v25, %v24
    %v37 = vpack.c.bf16 %v27, %v26
    %v38 = vpack.c.bf16 %v29, %v28
    %v39 = vpack.c.bf16 %v31, %v30
    %v40 = vld [vmem:[%s1] sm:$0xf]
    %vm41 = vcmask 64512
    %v43 = vsel %vm41, %v32, 0
    %v46 = vsel %vm41, %v33, 0
    %v49 = vsel %vm41, %v34, 0
    %v52 = vsel %vm41, %v35, 0
    %v55 = vsel %vm41, %v36, 0
    %v58 = vsel %vm41, %v37, 0
    %v61 = vsel %vm41, %v38, 0
    %v64 = vsel %vm41, %v39, 0
    %vm66 = vcmask 1043456
    %v68 = vsel %vm66, %v40, 0
    %70 = vmatprep.subr.bf16.mxu0 0
    %71 = vmatpush1.bf16.msra.mxu0 %v68
    %72 = vmatprep.subr.bf16.mxu0 0
    %73 = vmatpush1.bf16.msra.mxu0 0
    %74 = vmatprep.subr.bf16.mxu0 0
    %75 = vmatpush1.bf16.msra.mxu0 0
    %76 = vmatprep.subr.bf16.mxu0 0
    %77 = vmatpush1.bf16.msra.mxu0 0
    %78 = vmatprep.subr.bf16.mxu0 0
    %79 = vmatpush1.bf16.msra.mxu0 0
    %80 = vmatprep.subr.bf16.mxu0 0
    %81 = vmatpush1.bf16.msra.mxu0 0
    %82 = vmatprep.subr.bf16.mxu0 0
    %83 = vmatpush1.bf16.msra.mxu0 0
    %84 = vmatprep.subr.bf16.mxu0 0
    %85 = vmatpush1.bf16.msra.mxu0 0
    %86 = vmatprep.subr.bf16.mxu0 0
    %87 = vmatpush1.bf16.msra.mxu0 0
    %88 = vmatprep.subr.bf16.mxu0 0
    %89 = vmatpush1.bf16.msra.mxu0 0
    %90 = vmatprep.subr.bf16.mxu0 0
    %91 = vmatpush1.bf16.msra.mxu0 0
    %92 = vmatprep.subr.bf16.mxu0 0
    %93 = vmatpush1.bf16.msra.mxu0 0
    %94 = vmatprep.subr.bf16.mxu0 0
    %95 = vmatpush1.bf16.msra.mxu0 0
    %96 = vmatprep.subr.bf16.mxu0 0
    %97 = vmatpush1.bf16.msra.mxu0 0
    %98 = vmatprep.subr.bf16.mxu0 0
    %99 = vmatpush1.bf16.msra.mxu0 0
    %100 = vmatprep.subr.bf16.mxu0 0
    %101 = vmatpush1.bf16.msra.mxu0 0
    %102 = vmatprep.mubr.bf16.mxu0 0
    %103 = vmatmul.mubr.bf16.gmra.mrb[0].mxu0 %v43
    %v104 = vpop.f32.mrb[0].mxu0
    %v105 = vadd.f32 0.0, %v104
    %v106 = vpop.f32.mrb[0].mxu0
    %v107 = vpop.f32.mrb[0].mxu0
    %v108 = vadd.f32 0.0, %v107
    %v109 = vpop.f32.mrb[0].mxu0
    %110 = vmatprep.mubr.bf16.mxu0 0
    %111 = vmatmul.mubr.bf16.gmra.mrb[0].mxu0 %v46
    %v112 = vpop.f32.mrb[0].mxu0
    %v113 = vadd.f32 0.0, %v112
    %v114 = vpop.f32.mrb[0].mxu0
    %v115 = vpop.f32.mrb[0].mxu0
    %v116 = vadd.f32 0.0, %v115
    %v117 = vpop.f32.mrb[0].mxu0
    %118 = vmatprep.mubr.bf16.mxu0 0
    %119 = vmatmul.mubr.bf16.gmra.mrb[0].mxu0 %v49
    %v120 = vpop.f32.mrb[0].mxu0
    %v121 = vadd.f32 0.0, %v120
    %v122 = vpop.f32.mrb[0].mxu0
    %v123 = vpop.f32.mrb[0].mxu0
    %v124 = vadd.f32 0.0, %v123
    %v125 = vpop.f32.mrb[0].mxu0
    %126 = vmatprep.mubr.bf16.mxu0 0
    %127 = vmatmul.mubr.bf16.gmra.mrb[0].mxu0 %v52
    %v128 = vpop.f32.mrb[0].mxu0
    %v129 = vadd.f32 0.0, %v128
    %v130 = vpop.f32.mrb[0].mxu0
    %v131 = vpop.f32.mrb[0].mxu0
    %v132 = vadd.f32 0.0, %v131
    %v133 = vpop.f32.mrb[0].mxu0
    %134 = vmatprep.mubr.bf16.mxu0 0
    %135 = vmatmul.mubr.bf16.gmra.mrb[0].mxu0 %v55
    %v136 = vpop.f32.mrb[0].mxu0
    %v137 = vadd.f32 0.0, %v136
    %v138 = vpop.f32.mrb[0].mxu0
    %v139 = vpop.f32.mrb[0].mxu0
    %v140 = vadd.f32 0.0, %v139
    %v141 = vpop.f32.mrb[0].mxu0
    %142 = vmatprep.mubr.bf16.mxu0 0
    %143 = vmatmul.mubr.bf16.gmra.mrb[0].mxu0 %v58
    %v144 = vpop.f32.mrb[0].mxu0
    %v145 = vadd.f32 0.0, %v144
    %v146 = vpop.f32.mrb[0].mxu0
    %v147 = vpop.f32.mrb[0].mxu0
    %v148 = vadd.f32 0.0, %v147
    %v149 = vpop.f32.mrb[0].mxu0
    %150 = vmatprep.mubr.bf16.mxu0 0
    %151 = vmatmul.mubr.bf16.gmra.mrb[0].mxu0 %v61
    %v152 = vpop.f32.mrb[0].mxu0
    %v153 = vadd.f32 0.0, %v152
    %v154 = vpop.f32.mrb[0].mxu0
    %v155 = vpop.f32.mrb[0].mxu0
    %v156 = vadd.f32 0.0, %v155
    %v157 = vpop.f32.mrb[0].mxu0
    %158 = vmatprep.mubr.bf16.mxu0 0
    %159 = vmatmul.mubr.bf16.gmra.mrb[0].mxu0 %v64
    %v160 = vpop.f32.mrb[0].mxu0
    %v161 = vadd.f32 0.0, %v160
    %v162 = vpop.f32.mrb[0].mxu0
    %v163 = vpop.f32.mrb[0].mxu0
    %v164 = vadd.f32 0.0, %v163
    %v165 = vpop.f32.mrb[0].mxu0
    %166 = vdwg.mxu0
    %167 = vst [vmem:[#allocation2] sm:$0xff] %v105
    %168 = vst [vmem:[#allocation2 + $0x8] sm:$0xff] %v108
    %169 = vst [vmem:[#allocation2 + $0x10] sm:$0xff] %v113
    %170 = vst [vmem:[#allocation2 + $0x18] sm:$0xff] %v116
    %171 = vst [vmem:[#allocation2 + $0x20] sm:$0xff] %v121
    %172 = vst [vmem:[#allocation2 + $0x28] sm:$0xff] %v124
    %173 = vst [vmem:[#allocation2 + $0x30] sm:$0xff] %v129
    %174 = vst [vmem:[#allocation2 + $0x38] sm:$0xff] %v132
    %175 = vst [vmem:[#allocation2 + $0x40] sm:$0xff] %v137
    %176 = vst [vmem:[#allocation2 + $0x48] sm:$0xff] %v140
    %177 = vst [vmem:[#allocation2 + $0x50] sm:$0xff] %v145
    %178 = vst [vmem:[#allocation2 + $0x58] sm:$0xff] %v148
    %179 = vst [vmem:[#allocation2 + $0x60] sm:$0xff] %v153
    %180 = vst [vmem:[#allocation2 + $0x68] sm:$0xff] %v156
    %181 = vst [vmem:[#allocation2 + $0x70] sm:$0xff] %v161
    %182 = vst [vmem:[#allocation2 + $0x78] sm:$0xff] %v164
    %v183 = vadd.f32 %v105, %v108
    %v184 = vadd.f32 %v183, %v113
    %v185 = vadd.f32 %v184, %v116
    %v186 = vadd.f32 %v185, %v121
    %v187 = vadd.f32 %v186, %v124
    %v188 = vadd.f32 %v187, %v129
    %v189 = vadd.f32 %v188, %v132
    %v190 = vadd.f32 %v189, %v137
    %v191 = vadd.f32 %v190, %v140
    %v192 = vadd.f32 %v191, %v145
    %v193 = vadd.f32 %v192, %v148
    %v194 = vadd.f32 %v193, %v153
    %v195 = vadd.f32 %v194, %v156
    %v196 = vadd.f32 %v195, %v161
    %v197 = vadd.f32 %v196, %v164
    %v198 = vrot.slane %v197, 4
    %v199 = vadd.f32 %v197, %v198
    %v200 = vrot.slane %v199, 2
    %v201 = vadd.f32 %v199, %v200
    %v202 = vrot.slane %v201, 1
    %v203 = vadd.f32 %v201, %v202
    %204 = vst [vmem:[#allocation4] sm:$0x1] %v203
    %v205 = vmul.f32 %v105, %v105
    %v206 = vmul.f32 %v108, %v108
    %v207 = vmul.f32 %v113, %v113
    %v208 = vmul.f32 %v116, %v116
    %v209 = vmul.f32 %v121, %v121
    %v210 = vmul.f32 %v124, %v124
    %v211 = vmul.f32 %v129, %v129
    %v212 = vmul.f32 %v132, %v132
    %v213 = vmul.f32 %v137, %v137
    %v214 = vmul.f32 %v140, %v140
    %v215 = vmul.f32 %v145, %v145
    %v216 = vmul.f32 %v148, %v148
    %v217 = vmul.f32 %v153, %v153
    %v218 = vmul.f32 %v156, %v156
    %v219 = vmul.f32 %v161, %v161
    %v220 = vmul.f32 %v164, %v164
    %v221 = vadd.f32 %v205, %v206
    %v222 = vadd.f32 %v221, %v207
    %v223 = vadd.f32 %v222, %v208
    %v224 = vadd.f32 %v223, %v209
    %v225 = vadd.f32 %v224, %v210
    %v226 = vadd.f32 %v225, %v211
    %v227 = vadd.f32 %v226, %v212
    %v228 = vadd.f32 %v227, %v213
    %v229 = vadd.f32 %v228, %v214
    %v230 = vadd.f32 %v229, %v215
    %v231 = vadd.f32 %v230, %v216
    %v232 = vadd.f32 %v231, %v217
    %v233 = vadd.f32 %v232, %v218
    %v234 = vadd.f32 %v233, %v219
    %v235 = vadd.f32 %v234, %v220
    %v236 = vrot.slane %v235, 4
    %v237 = vadd.f32 %v235, %v236
    %v238 = vrot.slane %v237, 2
    %v239 = vadd.f32 %v237, %v238
    %v240 = vrot.slane %v239, 1
    %v241 = vadd.f32 %v239, %v240
    %242 = vst [vmem:[#allocation4 + $0x1] sm:$0x1] %v241
    // Predicated region
    $region10: #{tpu_custom_call.1} parent=1 // pred_check
      _
    $region11: #{tpu_custom_call.1} parent=1 // pred_check_branch
      %244 = sbr.rel (0) target = $region13
    $region12: #{tpu_custom_call.1} parent=1 // pred_region
      %s246 = ssub.s32 2048, 2048
      %247 = vsyncadd [#allocation3], %s246
      %s248 = sshll.u32 [#allocation2], 4
      %s249 = int_to_ptr.vmem [resolvable:$true] %s248
      %254 = dma.vmem_to_hbm [thread:$0]  %s249, 2048, %s2, [#allocation3], 128, 128, 8
    $region13: #{tpu_custom_call.1} parent=1 // pred_fallthru
      _
    // Predicated region
    $region14: #{tpu_custom_call.1} parent=1 // pred_check
      _
    $region15: #{tpu_custom_call.1} parent=1 // pred_check_branch
      %256 = sbr.rel (0) target = $region17
    $region16: #{tpu_custom_call.1} parent=1 // pred_region
      %s258 = ssub.s32 32, 32
      %259 = vsyncadd [#allocation5], %s258
      %s261 = sshll.u32 [#allocation4], 4
      %s262 = int_to_ptr.vmem [resolvable:$true] %s261
      %264 = dma.vmem_to_hbm [thread:$0]  %s262, 32, %s3, [#allocation5]
    $region17: #{tpu_custom_call.1} parent=1 // pred_fallthru
      _
    // Predicated region
    $region18: #{tpu_custom_call.1} parent=1 // pred_check
      _
    $region19: #{tpu_custom_call.1} parent=1 // pred_check_branch
      %266 = sbr.rel (0) target = $region21
    $region20: #{tpu_custom_call.1} parent=1 // pred_region
      %267 = dma.done [#allocation3], 2048
    $region21: #{tpu_custom_call.1} parent=1 // pred_fallthru
      _
    // Predicated region
    $region22: #{tpu_custom_call.1} parent=1 // pred_check
      _
    $region23: #{tpu_custom_call.1} parent=1 // pred_check_branch
      %269 = sbr.rel (0) target = $region25
    $region24: #{tpu_custom_call.1} parent=1 // pred_region
      %270 = dma.done [#allocation5], 32
    $region25: #{tpu_custom_call.1} parent=1 // pred_fallthru
      _
    %271 = vsyncpa [#allocation3], 1
    %272 = vsyncpa [#allocation5], 1

</llo_original>
